<compile_context>
chip_gen: v7x
topology: tpu7x:2x2x1
jax: 0.10.0
libtpu: 0.0.40
codegen_flags: <defaults>
</compile_context>

<pallas_src>
import jax
import jax.numpy as jnp
from jax.experimental import pallas as pl
from jax.experimental.pallas import tpu as pltpu


def _vq_kernel(z_ref, e_ref, esq_ref, zq_ref, idx_ref, sse_ref):
    # z_ref:   (1, C, T)  native channel-major spatial tile
    # e_ref:   (n_e, D)   full codebook (single-buffered, grid-invariant)
    # esq_ref: (1, n_e)   precomputed ||e||^2 (hoisted out of the kernel)
    # zq_ref:  (1, C, T)  quantized tile, written back in native layout
    # idx_ref: (1, 1, T)  lane-dense nearest-code indices
    # sse_ref: (1, 1, T)  lane-dense per-token squared error
    z_blk = z_ref[...]                              # (1, C, T)
    z_ct = z_blk[0].astype(jnp.float32)             # (C, T)
    z = z_ct.T                                      # (T, C) token rows (small XLU transpose)
    e = e_ref[...].astype(jnp.float32)              # (n_e, D)
    n_e = e.shape[0]

    # d = ||z||^2 + ||e||^2 - 2 z e^T   -> (T, n_e); cross term on the MXU.
    # Kept in f32 and with the z_sq term included so argmin tie-breaks match
    # the torch / f32 reference bit-for-bit (see perf-review caveats).
    z_sq = jnp.sum(z * z, axis=1, keepdims=True)                    # (T, 1)
    cross = jnp.dot(z, e.T, preferred_element_type=jnp.float32)     # (T, n_e)
    d = z_sq + esq_ref[...] - 2.0 * cross                           # (T, n_e)

    # argmin over codes, first-occurrence tie-break (== torch.argmin).
    min_d = jnp.min(d, axis=1, keepdims=True)                       # (T, 1)
    col = jax.lax.broadcasted_iota(jnp.int32, d.shape, 1)           # (T, n_e)
    idx = jnp.min(jnp.where(d == min_d, col, n_e), axis=1, keepdims=True)

    # Exact gather of the selected codebook rows via one-hot matmul (MXU).
    onehot = (col == idx).astype(jnp.float32)                       # (T, n_e)
    zq = jnp.dot(onehot, e, preferred_element_type=jnp.float32)     # (T, D)

    # Write z_q back in the native (C, T) layout -- no wrapper transpose.
    zq_ref[...] = zq.T.astype(zq_ref.dtype)[None, :, :]             # (1, C, T)

    # Lane-dense outputs.
    idx_ref[...] = idx.reshape(1, 1, -1)                            # (1, 1, T)
    diff = zq - z
    sse_ref[...] = jnp.sum(diff * diff, axis=1, keepdims=True).reshape(1, 1, -1)


def _vmem_budget_bytes():
    """Generation-aware scoped-VMEM budget: ~75% of the physical per-core VMEM
    (v7x: 64 MiB -> 48 MiB; v5e/v6e: 128 MiB -> 96 MiB), leaving headroom for
    compiler-internal scratch, semaphores and the pipelined I/O buffers."""
    try:
        cap = pltpu.get_tpu_info().vmem_capacity_bytes
    except Exception:
        cap = 64 * 1024 * 1024          # conservative fallback (v7x-sized)
    return int(cap) * 3 // 4


def _pick_spatial_tile(batch, hw, d, n_e, vmem_budget, target=2048, min_steps=4):
    """Spatial (token) tile T per grid step.

    Lane rule: T must be a multiple of 128 or equal to the full H*W extent.
    The VMEM cap accounts for the ~5 live (T, n_e) slabs (cross, d, int32
    iota, where temp, onehot), the (T, D) temporaries, the double-buffered
    z / z_q / idx / sse blocks and the resident single-buffered codebook.
    """
    resident = 4 * n_e * (d + 1)                        # codebook + ||e||^2 (Buffered(1))
    per_row = 4 * (5 * n_e + 8 * d) + 4 * (4 * d + 4)   # slab temps + 2x-buffered I/O
    cap_rows = max(128, (vmem_budget - resident) // per_row)

    if hw <= 128 or hw % 128 != 0:
        # Full-extent tile (always a legal block shape).
        # TODO(synk): very large HW that is not a multiple of 128 would need
        # padding to a 128-multiple to be tiled; typical VQ shapes don't.
        return hw

    # Candidate tiles: multiples of 128 that divide HW exactly (no padding).
    divisors = [m for m in range(128, hw + 1, 128) if hw % m == 0]
    fitting = [m for m in divisors if m <= min(target, cap_rows)] or [128]
    t = max(fitting)
    # Guarantee enough grid steps for DMA/compute pipelining and megacore
    # sharding (v7x has 2 TensorCores) when the workload allows it.
    while batch * (hw // t) < min_steps:
        smaller = [m for m in divisors if m < t]
        if not smaller:
            break
        t = max(smaller)
    return t


def _invariant_spec(shape):
    """Grid-invariant input: constant index_map, single-buffered so the dead
    second pipeline buffer does not burn VMEM (perf review)."""
    zero = (0,) * len(shape)
    index_map = lambda b, t: zero
    try:
        return pl.BlockSpec(shape, index_map, pipeline_mode=pl.Buffered(1))
    except TypeError:   # very old BlockSpec without pipeline_mode
        return pl.BlockSpec(shape, index_map)


def vector_quantizer_forward(z, embedding, beta=0.25, legacy=True):
    """Pallas VectorQuantizer.forward (remap=None, sane_index_shape=False).

    z: (B, C, H, W) float32, embedding: (n_e, e_dim) float32, e_dim == C.
    Returns (z_q (B, C, H, W), loss scalar, (None, None, indices (N,) int32)).
    """
    B, C, H, W = z.shape
    n_e, e_dim = embedding.shape
    assert e_dim == C, "e_dim must equal channel dim"
    HW = H * W

    # Free, layout-preserving view: (B, C, H, W) -> (B, C, HW).  No transpose.
    z3 = z.reshape(B, C, HW)

    budget = _vmem_budget_bytes()
    T = _pick_spatial_tile(B, HW, C, n_e, budget)
    num_t = pl.cdiv(HW, T)
    HWp = num_t * T
    if HWp != HW:   # safety net; tile selection avoids this for typical shapes
        z3 = jnp.pad(z3, ((0, 0), (0, 0), (0, HWp - HW)))

    # ||e||^2 hoisted out of the kernel (grid-invariant).
    e_sq = jnp.sum(embedding.astype(jnp.float32) ** 2, axis=1).reshape(1, n_e)

    # TODO(synk): for very large codebooks (n_e ~ 16K+) a second grid axis over
    # n_e with a running (min_d, argmin) carry would avoid the (T, n_e) slab.
    zq3, idx, sse = pl.pallas_call(
        _vq_kernel,
        out_shape=(
            jax.ShapeDtypeStruct((B, C, HWp), jnp.float32),
            jax.ShapeDtypeStruct((B, 1, HWp), jnp.int32),
            jax.ShapeDtypeStruct((B, 1, HWp), jnp.float32),
        ),
        grid=(B, num_t),
        in_specs=[
            pl.BlockSpec((1, C, T), lambda b, t: (b, 0, t)),
            _invariant_spec((n_e, e_dim)),
            _invariant_spec((1, n_e)),
        ],
        out_specs=(
            pl.BlockSpec((1, C, T), lambda b, t: (b, 0, t)),
            pl.BlockSpec((1, 1, T), lambda b, t: (b, 0, t)),
            pl.BlockSpec((1, 1, T), lambda b, t: (b, 0, t)),
        ),
        compiler_params=pltpu.CompilerParams(
            dimension_semantics=("parallel", "parallel"),   # no cross-step state
            vmem_limit_bytes=budget,
        ),
    )(z3, embedding, e_sq)

    if HWp != HW:
        zq3 = zq3[:, :, :HW]
        idx = idx[:, :, :HW]
        sse = sse[:, :, :HW]

    mse = jnp.sum(sse) / jnp.float32(B * HW * C)
    # legacy / non-legacy branches differ only in stop_gradient routing; the
    # forward value is (1 + beta) * mse in both cases.
    loss = beta * mse + mse
    # TODO(synk): straight-through estimator / stop_gradient semantics are an
    # autodiff (training-time) concern; forward values here are exact.

    zq_out = zq3.reshape(B, C, H, W)                     # native layout, free reshape
    min_encoding_indices = idx.reshape(-1)               # (N,) int32 (torch: int64)
    return zq_out, loss, (None, None, min_encoding_indices)


def _reference_forward(z, embedding, beta=0.25):
    B, C, H, W = z.shape
    zp = jnp.transpose(z, (0, 2, 3, 1)).reshape(-1, C)
    d = (jnp.sum(zp**2, axis=1, keepdims=True)
         + jnp.sum(embedding**2, axis=1)[None, :]
         - 2.0 * zp @ embedding.T)
    idx = jnp.argmin(d, axis=1)
    zq = embedding[idx]
    mse = jnp.mean((zq - zp) ** 2)
    loss = beta * mse + mse
    zq_out = jnp.transpose(zq.reshape(B, H, W, C), (0, 3, 1, 2))
    return zq_out, loss, idx.astype(jnp.int32)


if __name__ == "__main__":
    key = jax.random.PRNGKey(0)
    k_z, k_e = jax.random.split(key)

    B, C, H, W = 2, 16, 8, 8       # e_dim = C = 16
    n_e, e_dim, beta = 128, 16, 0.25

    z = jax.random.normal(k_z, (B, C, H, W), dtype=jnp.float32)
    # nn.Embedding(n_e, e_dim).weight.data.uniform_(-1/n_e, 1/n_e)
    embedding = jax.random.uniform(
        k_e, (n_e, e_dim), dtype=jnp.float32, minval=-1.0 / n_e, maxval=1.0 / n_e
    )

    zq, loss, (_, _, indices) = vector_quantizer_forward(z, embedding, beta=beta)
    jax.block_until_ready((zq, loss, indices))

    zq_ref, loss_ref, idx_ref = _reference_forward(z, embedding, beta=beta)
    assert zq.shape == (B, C, H, W) and indices.shape == (B * H * W,)
    assert jnp.allclose(zq, zq_ref, atol=1e-5, rtol=1e-5)
    assert jnp.allclose(loss, loss_ref, atol=1e-6, rtol=1e-5)
    assert bool(jnp.all(indices == idx_ref))

    print("KERNEL_OK")
</pallas_src>

<mosaic_0001>
module attributes {stable_mosaic.version = 11 : i64} {
  func.func @_vq_kernel(%arg0: i32, %arg1: i32, %arg2: memref<1x16x64xf32, #tpu.memory_space<vmem>>, %arg3: memref<128x16xf32, #tpu.memory_space<vmem>>, %arg4: memref<1x128xf32, #tpu.memory_space<vmem>>, %arg5: memref<1x16x64xf32, #tpu.memory_space<vmem>>, %arg6: memref<1x1x64xi32, #tpu.memory_space<vmem>>, %arg7: memref<1x1x64xf32, #tpu.memory_space<vmem>>) attributes {dimension_semantics = [#tpu.dimension_semantics<parallel>, #tpu.dimension_semantics<parallel>], iteration_bounds = array<i64: 2, 1>, scalar_prefetch = 0 : i64, scratch_operands = 0 : i64, tpu.core_type = #tpu.core_type<tc>, window_params = [{transform_indices = @transform_0, window_bounds = array<i64: 1, 16, 64>}, {pipeline_mode = #tpu.pipeline_mode<synchronous>, transform_indices = @transform_1, window_bounds = array<i64: 128, 16>}, {pipeline_mode = #tpu.pipeline_mode<synchronous>, transform_indices = @transform_2, window_bounds = array<i64: 1, 128>}, {transform_indices = @transform_3, window_bounds = array<i64: 1, 16, 64>}, {transform_indices = @transform_4, window_bounds = array<i64: 1, 1, 64>}, {transform_indices = @transform_5, window_bounds = array<i64: 1, 1, 64>}]} {
    %c0 = arith.constant 0 : index
    %c0_0 = arith.constant 0 : index
    %c0_1 = arith.constant 0 : index
    %0 = vector.load %arg2[%c0, %c0_0, %c0_1] : memref<1x16x64xf32, #tpu.memory_space<vmem>>, vector<1x16x64xf32>
    %1 = vector.shape_cast %0 : vector<1x16x64xf32> to vector<16x64xf32>
    %2 = tpu.transpose %1, [1, 0] : vector<16x64xf32> -> vector<64x16xf32>
    %c0_2 = arith.constant 0 : index
    %c0_3 = arith.constant 0 : index
    %3 = vector.load %arg3[%c0_2, %c0_3] : memref<128x16xf32, #tpu.memory_space<vmem>>, vector<128x16xf32>
    %4 = arith.mulf %2, %2 : vector<64x16xf32>
    %cst = arith.constant dense<0.000000e+00> : vector<64xf32>
    %5 = vector.multi_reduction <add>, %4, %cst [1] : vector<64x16xf32> to vector<64xf32>
    %6 = vector.shape_cast %5 : vector<64xf32> to vector<64x1xf32>
    %7 = tpu.transpose %3, [1, 0] : vector<128x16xf32> -> vector<16x128xf32>
    %cst_4 = arith.constant dense<0.000000e+00> : vector<64x128xf32>
    %8 = tpu.matmul %2, %7, %cst_4 {dimension_numbers = #tpu.dot_dimension_numbers<[1], [0], [0], [1], [0, 0, 1, 1], [], []>} : vector<64x16xf32>, vector<16x128xf32>, vector<64x128xf32> -> vector<64x128xf32>
    %c0_5 = arith.constant 0 : index
    %c0_6 = arith.constant 0 : index
    %9 = vector.load %arg4[%c0_5, %c0_6] : memref<1x128xf32, #tpu.memory_space<vmem>>, vector<1x128xf32>
    %10 = vector.broadcast %6 : vector<64x1xf32> to vector<64x128xf32>
    %11 = vector.broadcast %9 : vector<1x128xf32> to vector<64x128xf32>
    %12 = arith.addf %10, %11 : vector<64x128xf32>
    %cst_7 = arith.constant 2.000000e+00 : f32
    %13 = vector.broadcast %cst_7 : f32 to vector<64x128xf32>
    %14 = arith.mulf %13, %8 : vector<64x128xf32>
    %15 = arith.subf %12, %14 : vector<64x128xf32>
    %cst_8 = arith.constant dense<0x7F800000> : vector<64xf32>
    %16 = vector.multi_reduction <minimumf>, %15, %cst_8 [1] : vector<64x128xf32> to vector<64xf32>
    %17 = vector.shape_cast %16 : vector<64xf32> to vector<64x1xf32>
    %18 = tpu.iota {dimensions = array<i32: 1>} : vector<64x128xi32>
    %19 = vector.broadcast %17 : vector<64x1xf32> to vector<64x128xf32>
    %20 = arith.cmpf oeq, %15, %19 : vector<64x128xf32>
    %c128_i32 = arith.constant 128 : i32
    %21 = vector.broadcast %c128_i32 : i32 to vector<64x128xi32>
    %22 = arith.select %20, %18, %21 : vector<64x128xi1>, vector<64x128xi32>
    %cst_9 = arith.constant dense<2147483647> : vector<64xi32>
    %23 = vector.multi_reduction <minsi>, %22, %cst_9 [1] : vector<64x128xi32> to vector<64xi32>
    %24 = vector.shape_cast %23 : vector<64xi32> to vector<64x1xi32>
    %25 = vector.broadcast %24 : vector<64x1xi32> to vector<64x128xi32>
    %26 = arith.cmpi eq, %18, %25 : vector<64x128xi32>
    %27 = arith.extui %26 : vector<64x128xi1> to vector<64x128xi32>
    %28 = arith.sitofp %27 : vector<64x128xi32> to vector<64x128xf32>
    %cst_10 = arith.constant dense<0.000000e+00> : vector<64x16xf32>
    %29 = tpu.matmul %28, %3, %cst_10 {dimension_numbers = #tpu.dot_dimension_numbers<[1], [0], [0], [1], [0, 0, 1, 1], [], []>} : vector<64x128xf32>, vector<128x16xf32>, vector<64x16xf32> -> vector<64x16xf32>
    %30 = tpu.transpose %29, [1, 0] : vector<64x16xf32> -> vector<16x64xf32>
    %31 = vector.shape_cast %30 : vector<16x64xf32> to vector<1x16x64xf32>
    %c0_11 = arith.constant 0 : index
    %c0_12 = arith.constant 0 : index
    %c0_13 = arith.constant 0 : index
    %32 = vector.load %arg5[%c0_11, %c0_12, %c0_13] : memref<1x16x64xf32, #tpu.memory_space<vmem>>, vector<1x16x64xf32>
    tpu.vector_store %arg5[%c0_11, %c0_12, %c0_13], %31 {strides = array<i32>} : memref<1x16x64xf32, #tpu.memory_space<vmem>>, vector<1x16x64xf32>,
    %33 = vector.shape_cast %24 : vector<64x1xi32> to vector<1x1x64xi32>
    %c0_14 = arith.constant 0 : index
    %c0_15 = arith.constant 0 : index
    %c0_16 = arith.constant 0 : index
    %34 = vector.load %arg6[%c0_14, %c0_15, %c0_16] : memref<1x1x64xi32, #tpu.memory_space<vmem>>, vector<1x1x64xi32>
    tpu.vector_store %arg6[%c0_14, %c0_15, %c0_16], %33 {strides = array<i32>} : memref<1x1x64xi32, #tpu.memory_space<vmem>>, vector<1x1x64xi32>,
    %35 = arith.subf %29, %2 : vector<64x16xf32>
    %36 = arith.mulf %35, %35 : vector<64x16xf32>
    %cst_17 = arith.constant dense<0.000000e+00> : vector<64xf32>
    %37 = vector.multi_reduction <add>, %36, %cst_17 [1] : vector<64x16xf32> to vector<64xf32>
    %38 = vector.shape_cast %37 : vector<64xf32> to vector<64x1xf32>
    %39 = vector.shape_cast %38 : vector<64x1xf32> to vector<1x1x64xf32>
    %c0_18 = arith.constant 0 : index
    %c0_19 = arith.constant 0 : index
    %c0_20 = arith.constant 0 : index
    %40 = vector.load %arg7[%c0_18, %c0_19, %c0_20] : memref<1x1x64xf32, #tpu.memory_space<vmem>>, vector<1x1x64xf32>
    tpu.vector_store %arg7[%c0_18, %c0_19, %c0_20], %39 {strides = array<i32>} : memref<1x1x64xf32, #tpu.memory_space<vmem>>, vector<1x1x64xf32>,
    return
  }
  func.func @transform_0(%arg0: i32, %arg1: i32) -> (i32, i32, i32) {
    %c0_i32 = arith.constant 0 : i32
    %c0_i32_0 = arith.constant 0 : i32
    return %arg0, %c0_i32, %arg1 : i32, i32, i32
  }
  func.func @transform_1(%arg0: i32, %arg1: i32) -> (i32, i32) {
    %c0_i32 = arith.constant 0 : i32
    %c0_i32_0 = arith.constant 0 : i32
    %c0_i32_1 = arith.constant 0 : i32
    return %c0_i32, %c0_i32_0 : i32, i32
  }
  func.func @transform_2(%arg0: i32, %arg1: i32) -> (i32, i32) {
    %c0_i32 = arith.constant 0 : i32
    %c0_i32_0 = arith.constant 0 : i32
    %c0_i32_1 = arith.constant 0 : i32
    return %c0_i32, %c0_i32_0 : i32, i32
  }
  func.func @transform_3(%arg0: i32, %arg1: i32) -> (i32, i32, i32) {
    %c0_i32 = arith.constant 0 : i32
    %c0_i32_0 = arith.constant 0 : i32
    return %arg0, %c0_i32, %arg1 : i32, i32, i32
  }
  func.func @transform_4(%arg0: i32, %arg1: i32) -> (i32, i32, i32) {
    %c0_i32 = arith.constant 0 : i32
    %c0_i32_0 = arith.constant 0 : i32
    return %arg0, %c0_i32, %arg1 : i32, i32, i32
  }
  func.func @transform_5(%arg0: i32, %arg1: i32) -> (i32, i32, i32) {
    %c0_i32 = arith.constant 0 : i32
    %c0_i32_0 = arith.constant 0 : i32
    return %arg0, %c0_i32, %arg1 : i32, i32, i32
  }
}

</mosaic_0001>

<llo_original>
// kernel: tpu_custom_call.1
$region0: #{tpu_custom_call.1}
  #allocation0 [shape = 'u32[]', space=smem, size = 0x4, offset = 0x4, fixed_abs, tag = 'smem constant byte address 0x4 - core index']
  #allocation1 [shape = 'u32[144,128]{1,0:T(1,128)}', space=vmem, size = 0x12000, scoped, tag = 'internal scratch']
  %s0 = inlined_call_operand.vmem [shape: f32[2,16,64], index: 0, kind: input, shape index: {}]
  %s1 = inlined_call_operand.vmem [shape: f32[128,16], index: 1, kind: input, shape index: {}]
  %s2 = inlined_call_operand.vmem [shape: f32[1,128], index: 2, kind: input, shape index: {}]
  %s3 = inlined_call_operand.hbm [shape: f32[2,16,64], index: 3, kind: output, shape index: {0}]
  %s4 = inlined_call_operand.hbm [shape: s32[2,1,64], index: 4, kind: output, shape index: {1}]
  %s5 = inlined_call_operand.hbm [shape: f32[2,1,64], index: 5, kind: output, shape index: {2}]
  %6 = xla_tuple %s3, %s4, %s5
  %s7 = sld [smem:[#allocation0]]
  $region61: #{tpu_custom_call.1} parent=0
    _
  %s9 = ssub.s32 1, %s7
  %s10 = scalar_select 0, %s9, %s7
  $region1: #{tpu_custom_call.1} parent=0
    #allocation2 [shape = 'u8[16384]{0}', space=vmem, size = 0x4000, scoped, tag = 'output window, operand 0']
    #allocation3 [shape = 's32[2]{0}', space=sflag, size = 0x8, scoped, tag = 'scoped memory for tpu_custom_call.1']
    #allocation4 [shape = 'u8[1024]{0}', space=vmem, size = 0x400, scoped, tag = 'output window, operand 1']
    #allocation5 [shape = 's32[2]{0}', space=sflag, size = 0x8, scoped, tag = 'scoped memory for tpu_custom_call.1']
    #allocation6 [shape = 'u8[1024]{0}', space=vmem, size = 0x400, scoped, tag = 'output window, operand 2']
    %11 = vsyncpa [#allocation3], 0
    %s12 = scalar_lea.sflag [#allocation3], 1
    %13 = vsyncpa %s12, 0
    %14 = vsyncpa [#allocation5], 0
    %s15 = scalar_lea.sflag [#allocation5], 1
    %16 = vsyncpa %s15, 0
    loop: start=0, step=1, limit=4
    $region2: #{tpu_custom_call.1} parent=1 // loop_pre_header
      _
    $region3: #{tpu_custom_call.1} parent=1 // loop_header
      %s18 = sphi 0, %s22
      %p19 = scmp.ge.s32.totalorder %s18, 4
      %s25 = sphi 0, %s37
      %s26 = sphi 0, %s33
      %s27 = sphi 0, %s25
      %s28 = sphi 0, %s26
      %s29 = sphi 0, %s27
      %s30 = sphi 0, %s28
      %s42 = sphi 0, %s44
      %s45 = sphi 0, %s42
      %s46 = sphi 0, %s45
      %s62 = sphi 0, %s46
      %s66 = sphi 0, %s66
      %s68 = sphi 0, %s66
      %s69 = sphi 0, %s68
      %s83 = sphi 0, %s69
      %s87 = sphi 0, %s87
      %s89 = sphi 0, %s87
      %s90 = sphi 0, %s89
      %s104 = sphi 0, %s90
      %s112 = sphi 0, %s114
      %s115 = sphi 0, %s112
      %s116 = sphi 0, %s115
      %s132 = sphi 0, %s116
      %s140 = sphi 0, %s142
      %s143 = sphi 0, %s140
      %s144 = sphi 0, %s143
      %s160 = sphi 0, %s144
      %s168 = sphi 0, %s170
      %s171 = sphi 0, %s168
      %s172 = sphi 0, %s171
      %s188 = sphi 0, %s172
    $region4: #{tpu_custom_call.1} parent=1 // loop_header_branch
      %21 = sbr.rel (%p19) target = $region8
    $region5: #{tpu_custom_call.1} parent=1 // loop_body
      %s23 = ssub.s32 %s18, 1
      %s24 = ssub.s32 %s18, 2
      %s31 = sadd.s32 1, %s26
      %p32 = scmp.ge.s32.totalorder %s31, 1
      %s33 = scalar_select %p32, 0, %s31
      %s34 = sadd.s32 1, %s25
      %s35 = scalar_select %p32, %s34, %s25
      %p36 = scmp.ge.s32.totalorder %s35, 2
      %s37 = scalar_select %p36, 0, %s35
      %s38 = ssub.s32 %s25, %s37
      %s39 = ssub.s32 %s26, %s33
      %s40 = sor.u32 %s38, %s39
      %p41 = scmp.eq.s32.totalorder %s40, 0
      %s43 = sadd.s32 %s42, 1
      %s44 = scalar_select %p41, %s42, %s43
      %p47 = pneg %p41
      %p48 = scmp.eq.s32.totalorder %s18, 1
      %p49 = por %p47, %p48
      %p50 = scmp.ne.s32.totalorder %s42, %s45
      %p51 = scmp.eq.s32.totalorder %s18, 0
      %p52 = por %p50, %p51
      %p53 = scmp.ne.s32.totalorder %s42, %s45
      %p54 = scmp.eq.s32.totalorder %s23, 1
      %p55 = por %p53, %p54
      %p56 = scmp.ne.s32.totalorder %s45, %s46
      %p57 = scmp.eq.s32.totalorder %s23, 0
      %p58 = por %p56, %p57
      %p59 = scmp.ne.s32.totalorder %s45, %s46
      %p60 = scmp.eq.s32.totalorder %s24, 1
      %p61 = por %p59, %p60
      %p63 = scmp.ne.s32.totalorder %s46, %s62
      %p64 = scmp.eq.s32.totalorder %s24, 0
      %p65 = por %p63, %p64
      %s67 = sadd.s32 %s66, 1
      %p70 = scmp.eq.s32.totalorder %s18, 1
      %p71 = scmp.ne.s32.totalorder %s66, %s68
      %p72 = scmp.eq.s32.totalorder %s18, 0
      %p73 = por %p71, %p72
      %p74 = scmp.ne.s32.totalorder %s66, %s68
      %p75 = scmp.eq.s32.totalorder %s23, 1
      %p76 = por %p74, %p75
      %p77 = scmp.ne.s32.totalorder %s68, %s69
      %p78 = scmp.eq.s32.totalorder %s23, 0
      %p79 = por %p77, %p78
      %p80 = scmp.ne.s32.totalorder %s68, %s69
      %p81 = scmp.eq.s32.totalorder %s24, 1
      %p82 = por %p80, %p81
      %p84 = scmp.ne.s32.totalorder %s69, %s83
      %p85 = scmp.eq.s32.totalorder %s24, 0
      %p86 = por %p84, %p85
      %s88 = sadd.s32 %s87, 1
      %p91 = scmp.eq.s32.totalorder %s18, 1
      %p92 = scmp.ne.s32.totalorder %s87, %s89
      %p93 = scmp.eq.s32.totalorder %s18, 0
      %p94 = por %p92, %p93
      %p95 = scmp.ne.s32.totalorder %s87, %s89
      %p96 = scmp.eq.s32.totalorder %s23, 1
      %p97 = por %p95, %p96
      %p98 = scmp.ne.s32.totalorder %s89, %s90
      %p99 = scmp.eq.s32.totalorder %s23, 0
      %p100 = por %p98, %p99
      %p101 = scmp.ne.s32.totalorder %s89, %s90
      %p102 = scmp.eq.s32.totalorder %s24, 1
      %p103 = por %p101, %p102
      %p105 = scmp.ne.s32.totalorder %s90, %s104
      %p106 = scmp.eq.s32.totalorder %s24, 0
      %p107 = por %p105, %p106
      %s108 = ssub.s32 %s25, %s37
      %s109 = ssub.s32 %s26, %s33
      %s110 = sor.u32 %s108, %s109
      %p111 = scmp.eq.s32.totalorder %s110, 0
      %s113 = sadd.s32 %s112, 1
      %s114 = scalar_select %p111, %s112, %s113
      %p117 = pneg %p111
      %p118 = scmp.eq.s32.totalorder %s18, 1
      %p119 = por %p117, %p118
      %p120 = scmp.ne.s32.totalorder %s112, %s115
      %p121 = scmp.eq.s32.totalorder %s18, 0
      %p122 = por %p120, %p121
      %p123 = scmp.ne.s32.totalorder %s112, %s115
      %p124 = scmp.eq.s32.totalorder %s23, 1
      %p125 = por %p123, %p124
      %p126 = scmp.ne.s32.totalorder %s115, %s116
      %p127 = scmp.eq.s32.totalorder %s23, 0
      %p128 = por %p126, %p127
      %p129 = scmp.ne.s32.totalorder %s115, %s116
      %p130 = scmp.eq.s32.totalorder %s24, 1
      %p131 = por %p129, %p130
      %p133 = scmp.ne.s32.totalorder %s116, %s132
      %p134 = scmp.eq.s32.totalorder %s24, 0
      %p135 = por %p133, %p134
      %s136 = ssub.s32 %s25, %s37
      %s137 = ssub.s32 %s26, %s33
      %s138 = sor.u32 %s136, %s137
      %p139 = scmp.eq.s32.totalorder %s138, 0
      %s141 = sadd.s32 %s140, 1
      %s142 = scalar_select %p139, %s140, %s141
      %p145 = pneg %p139
      %p146 = scmp.eq.s32.totalorder %s18, 1
      %p147 = por %p145, %p146
      %p148 = scmp.ne.s32.totalorder %s140, %s143
      %p149 = scmp.eq.s32.totalorder %s18, 0
      %p150 = por %p148, %p149
      %p151 = scmp.ne.s32.totalorder %s140, %s143
      %p152 = scmp.eq.s32.totalorder %s23, 1
      %p153 = por %p151, %p152
      %p154 = scmp.ne.s32.totalorder %s143, %s144
      %p155 = scmp.eq.s32.totalorder %s23, 0
      %p156 = por %p154, %p155
      %p157 = scmp.ne.s32.totalorder %s143, %s144
      %p158 = scmp.eq.s32.totalorder %s24, 1
      %p159 = por %p157, %p158
      %p161 = scmp.ne.s32.totalorder %s144, %s160
      %p162 = scmp.eq.s32.totalorder %s24, 0
      %p163 = por %p161, %p162
      %s164 = ssub.s32 %s25, %s37
      %s165 = ssub.s32 %s26, %s33
      %s166 = sor.u32 %s164, %s165
      %p167 = scmp.eq.s32.totalorder %s166, 0
      %s169 = sadd.s32 %s168, 1
      %s170 = scalar_select %p167, %s168, %s169
      %p173 = pneg %p167
      %p174 = scmp.eq.s32.totalorder %s18, 1
      %p175 = por %p173, %p174
      %p176 = scmp.ne.s32.totalorder %s168, %s171
      %p177 = scmp.eq.s32.totalorder %s18, 0
      %p178 = por %p176, %p177
      %p179 = scmp.ne.s32.totalorder %s168, %s171
      %p180 = scmp.eq.s32.totalorder %s23, 1
      %p181 = por %p179, %p180
      %p182 = scmp.ne.s32.totalorder %s171, %s172
      %p183 = scmp.eq.s32.totalorder %s23, 0
      %p184 = por %p182, %p183
      %p185 = scmp.ne.s32.totalorder %s171, %s172
      %p186 = scmp.eq.s32.totalorder %s24, 1
      %p187 = por %p185, %p186
      %p189 = scmp.ne.s32.totalorder %s172, %s188
      %p190 = scmp.eq.s32.totalorder %s24, 0
      %p191 = por %p189, %p190
      %p192 = scmp.le.s32.totalorder 1, %s18
      %p193 = scmp.lt.s32.totalorder %s18, 3
      %p194 = pnand %p192, %p193
      %p195 = pneg %p194
      // Predicated region
      $region9: #{tpu_custom_call.1} parent=5 // pred_check
        _
      $region10: #{tpu_custom_call.1} parent=5 // pred_check_branch
        %197 = sbr.rel (%p194) target = $region12
      $region11: #{tpu_custom_call.1} parent=5 // pred_region
        %s198 = ssub.s32 %s18, 1
        // Predicated region
        $region13: #{tpu_custom_call.1} parent=11 // pred_check
          %p199 = pneg %p79
        $region14: #{tpu_custom_call.1} parent=11 // pred_check_branch
          %201 = sbr.rel (%p199) target = $region16
        $region15: #{tpu_custom_call.1} parent=11 // pred_region
          _
        $region16: #{tpu_custom_call.1} parent=11 // pred_fallthru
          _
        // Predicated region
        $region17: #{tpu_custom_call.1} parent=11 // pred_check
          %p202 = pneg %p100
        $region18: #{tpu_custom_call.1} parent=11 // pred_check_branch
          %204 = sbr.rel (%p202) target = $region20
        $region19: #{tpu_custom_call.1} parent=11 // pred_region
          _
        $region20: #{tpu_custom_call.1} parent=11 // pred_fallthru
          _
      $region12: #{tpu_custom_call.1} parent=5 // pred_fallthru
        _
      %p205 = scmp.lt.s32.totalorder %s18, 2
      // Predicated region
      $region21: #{tpu_custom_call.1} parent=5 // pred_check
        %p206 = pneg %p205
      $region22: #{tpu_custom_call.1} parent=5 // pred_check_branch
        %208 = sbr.rel (%p206) target = $region24
      $region23: #{tpu_custom_call.1} parent=5 // pred_region
        // Predicated region
        $region25: #{tpu_custom_call.1} parent=23 // pred_check
          %p209 = pneg %p52
        $region26: #{tpu_custom_call.1} parent=23 // pred_check_branch
          %211 = sbr.rel (%p209) target = $region28
        $region27: #{tpu_custom_call.1} parent=23 // pred_region
          %p212 = scmp.lt.s32.totalorder %s25, 1
          %s213 = scalar_select %p212, %s25, 1
          %p214 = scmp.lt.s32.totalorder %s26, 0
          %s215 = scalar_select %p214, %s26, 0
          %s216 = smul.addr %s213, 2
          %s217 = sadd.s32 %s215, %s216
          %s218 = smul.addr %s217, 8
          %s219 = scalar_lea.vmem %s0, %s218
        $region28: #{tpu_custom_call.1} parent=23 // pred_fallthru
          _
      $region24: #{tpu_custom_call.1} parent=5 // pred_fallthru
        _
      %p220 = scmp.le.s32.totalorder 1, %s18
      %p221 = scmp.lt.s32.totalorder %s18, 3
      %p222 = pnand %p220, %p221
      %p223 = pneg %p222
      // Predicated region
      $region29: #{tpu_custom_call.1} parent=5 // pred_check
        _
      $region30: #{tpu_custom_call.1} parent=5 // pred_check_branch
        %225 = sbr.rel (%p222) target = $region32
      $region31: #{tpu_custom_call.1} parent=5 // pred_region
        %s226 = ssub.s32 %s18, 1
        %p227 = scmp.lt.s32.totalorder %s27, 1
        %s228 = scalar_select %p227, %s27, 1
        %p229 = scmp.lt.s32.totalorder %s28, 0
        %s230 = scalar_select %p229, %s28, 0
        %s231 = smul.addr %s228, 2
        %s232 = sadd.s32 %s230, %s231
        %s233 = smul.addr %s232, 8
        %s234 = scalar_lea.vmem %s0, %s233
        %p235 = pneg %p58
        %p236 = pneg %p55
        %p237 = pneg %p79
        %p238 = pneg %p76
        %p239 = pneg %p100
        %p240 = pneg %p97
        %p241 = pneg %p128
        %p242 = pneg %p125
        %s243 = sand.u32 %s115, 1
        %s244 = scalar_lea.sflag [#allocation3], %s243
        %s245 = sand.u32 %s115, 1
        %s246 = smul.addr %s245, 16
        %s247 = scalar_lea.vmem [#allocation2], %s246
        %p248 = pneg %p156
        %p249 = pneg %p153
        %s250 = sand.u32 %s23, 1
        %s251 = scalar_lea.sflag [#allocation5], %s250
        %s252 = sand.u32 %s143, 1
        %s253 = scalar_lea.vmem [#allocation4], %s252
        %p254 = pneg %p184
        %p255 = pneg %p181
        %s256 = sand.u32 %s23, 1
        %s257 = scalar_lea.sflag [#allocation5], %s256
        %s258 = sand.u32 %s171, 1
        %s259 = scalar_lea.vmem [#allocation6], %s258
        %p260 = scmp.lt.s32.totalorder %s27, 1
        %s261 = scalar_select %p260, %s27, 1
        %p262 = scmp.lt.s32.totalorder %s28, 0
        %s263 = scalar_select %p262, %s28, 0
        %s264 = smul.addr %s261, 2
        %s265 = sadd.s32 %s263, %s264
        %s266 = smul.addr %s265, 8
        %s267 = scalar_lea.vmem %s0, %s266
        %v268 = vld [vmem:[%s267] sm:$0xff]
        %v269 = vld [vmem:[%s267 + $0x8] sm:$0xff]
        %270 = vxpose.xlu0.b32.start [1/16] %v268, 128
        %271 = vxpose.xlu0.b32.cont [2/16] %v269, 128
        %272 = vxpose.xlu0.b32.cont [3/16] 0.0, 128
        %273 = vxpose.xlu0.b32.cont [4/16] 0.0, 128
        %274 = vxpose.xlu0.b32.cont [5/16] 0.0, 128
        %275 = vxpose.xlu0.b32.cont [6/16] 0.0, 128
        %276 = vxpose.xlu0.b32.cont [7/16] 0.0, 128
        %277 = vxpose.xlu0.b32.cont [8/16] 0.0, 128
        %278 = vxpose.xlu0.b32.cont [9/16] 0.0, 128
        %279 = vxpose.xlu0.b32.cont [10/16] 0.0, 128
        %280 = vxpose.xlu0.b32.cont [11/16] 0.0, 128
        %281 = vxpose.xlu0.b32.cont [12/16] 0.0, 128
        %282 = vxpose.xlu0.b32.cont [13/16] 0.0, 128
        %283 = vxpose.xlu0.b32.cont [14/16] 0.0, 128
        %284 = vxpose.xlu0.b32.cont [15/16] 0.0, 128
        %285 = vxpose.xlu0.b32.end [16/16] 0.0, 128
        %v286 = vpop.trf.xlu0
        %v287 = vpop.trf.xlu0
        %v288 = vpop.trf.xlu0
        %v289 = vpop.trf.xlu0
        %v290 = vpop.trf.xlu0
        %v291 = vpop.trf.xlu0
        %v292 = vpop.trf.xlu0
        %v293 = vpop.trf.xlu0
        %v294 = vpop.trf.xlu0
        %v295 = vpop.trf.xlu0
        %v296 = vpop.trf.xlu0
        %v297 = vpop.trf.xlu0
        %v298 = vpop.trf.xlu0
        %v299 = vpop.trf.xlu0
        %v300 = vpop.trf.xlu0
        %v301 = vpop.trf.xlu0
        %v302 = vld [vmem:[%s1] sm:$0xff]
        %v303 = vld [vmem:[%s1 + $0x8] sm:$0xff]
        %v304 = vld [vmem:[%s1 + $0x10] sm:$0xff]
        %v305 = vld [vmem:[%s1 + $0x18] sm:$0xff]
        %v306 = vld [vmem:[%s1 + $0x20] sm:$0xff]
        %v307 = vld [vmem:[%s1 + $0x28] sm:$0xff]
        %v308 = vld [vmem:[%s1 + $0x30] sm:$0xff]
        %v309 = vld [vmem:[%s1 + $0x38] sm:$0xff]
        %v310 = vld [vmem:[%s1 + $0x40] sm:$0xff]
        %v311 = vld [vmem:[%s1 + $0x48] sm:$0xff]
        %v312 = vld [vmem:[%s1 + $0x50] sm:$0xff]
        %v313 = vld [vmem:[%s1 + $0x58] sm:$0xff]
        %v314 = vld [vmem:[%s1 + $0x60] sm:$0xff]
        %v315 = vld [vmem:[%s1 + $0x68] sm:$0xff]
        %v316 = vld [vmem:[%s1 + $0x70] sm:$0xff]
        %v317 = vld [vmem:[%s1 + $0x78] sm:$0xff]
        %v318 = vmul.f32 %v286, %v286
        %v319 = vmul.f32 %v287, %v287
        %v320 = vmul.f32 %v288, %v288
        %v321 = vmul.f32 %v289, %v289
        %v322 = vmul.f32 %v290, %v290
        %v323 = vmul.f32 %v291, %v291
        %v324 = vmul.f32 %v292, %v292
        %v325 = vmul.f32 %v293, %v293
        %vm326 = vcmask 130048
        %v327 = vsel %vm326, %v318, 0.0
        %328 = vadd.xlane.f32.xlu0 %v327
        %v329 = vpop.xlane.xlu0 %328
        %v330 = vsel %vm326, %v319, 0.0
        %331 = vadd.xlane.f32.xlu0 %v330
        %v332 = vpop.xlane.xlu0 %331
        %v333 = vsel %vm326, %v320, 0.0
        %334 = vadd.xlane.f32.xlu0 %v333
        %v335 = vpop.xlane.xlu0 %334
        %v336 = vsel %vm326, %v321, 0.0
        %337 = vadd.xlane.f32.xlu0 %v336
        %v338 = vpop.xlane.xlu0 %337
        %v339 = vsel %vm326, %v322, 0.0
        %340 = vadd.xlane.f32.xlu0 %v339
        %v341 = vpop.xlane.xlu0 %340
        %v342 = vsel %vm326, %v323, 0.0
        %343 = vadd.xlane.f32.xlu0 %v342
        %v344 = vpop.xlane.xlu0 %343
        %v345 = vsel %vm326, %v324, 0.0
        %346 = vadd.xlane.f32.xlu0 %v345
        %v347 = vpop.xlane.xlu0 %346
        %v348 = vsel %vm326, %v325, 0.0
        %349 = vadd.xlane.f32.xlu0 %v348
        %v350 = vpop.xlane.xlu0 %349
        %v352 = vsel %vm326, %v286, 0
        %v355 = vsel %vm326, %v287, 0
        %v358 = vsel %vm326, %v288, 0
        %v361 = vsel %vm326, %v289, 0
        %v364 = vsel %vm326, %v290, 0
        %v367 = vsel %vm326, %v291, 0
        %v370 = vsel %vm326, %v292, 0
        %v373 = vsel %vm326, %v293, 0
        %v376 = vsel %vm326, %v302, 0
        %v379 = vsel %vm326, %v303, 0
        %v382 = vsel %vm326, %v304, 0
        %v385 = vsel %vm326, %v305, 0
        %v388 = vsel %vm326, %v306, 0
        %v391 = vsel %vm326, %v307, 0
        %v394 = vsel %vm326, %v308, 0
        %v397 = vsel %vm326, %v309, 0
        %v400 = vsel %vm326, %v310, 0
        %v403 = vsel %vm326, %v311, 0
        %v406 = vsel %vm326, %v312, 0
        %v409 = vsel %vm326, %v313, 0
        %v412 = vsel %vm326, %v314, 0
        %v415 = vsel %vm326, %v315, 0
        %v418 = vsel %vm326, %v316, 0
        %v421 = vsel %vm326, %v317, 0
        %423 = vmatprep.subr.mxu0 0.0
        %424 = vmatpush1.xpose.msra.mxu0 %v376
        %425 = vmatprep.subr.mxu0 0.0
        %426 = vmatpush1.xpose.msra.mxu0 %v379
        %427 = vmatprep.subr.mxu0 0.0
        %428 = vmatpush1.xpose.msra.mxu0 %v382
        %429 = vmatprep.subr.mxu0 0.0
        %430 = vmatpush1.xpose.msra.mxu0 %v385
        %431 = vmatprep.subr.mxu0 0.0
        %432 = vmatpush1.xpose.msra.mxu0 %v388
        %433 = vmatprep.subr.mxu0 0.0
        %434 = vmatpush1.xpose.msra.mxu0 %v391
        %435 = vmatprep.subr.mxu0 0.0
        %436 = vmatpush1.xpose.msra.mxu0 %v394
        %437 = vmatprep.subr.mxu0 0.0
        %438 = vmatpush1.xpose.msra.mxu0 %v397
        %439 = vmatprep.subr.mxu0 0.0
        %440 = vmatpush1.xpose.msra.mxu0 %v400
        %441 = vmatprep.subr.mxu0 0.0
        %442 = vmatpush1.xpose.msra.mxu0 %v403
        %443 = vmatprep.subr.mxu0 0.0
        %444 = vmatpush1.xpose.msra.mxu0 %v406
        %445 = vmatprep.subr.mxu0 0.0
        %446 = vmatpush1.xpose.msra.mxu0 %v409
        %447 = vmatprep.subr.mxu0 0.0
        %448 = vmatpush1.xpose.msra.mxu0 %v412
        %449 = vmatprep.subr.mxu0 0.0
        %450 = vmatpush1.xpose.msra.mxu0 %v415
        %451 = vmatprep.subr.mxu0 0.0
        %452 = vmatpush1.xpose.msra.mxu0 %v418
        %453 = vmatprep.subr.mxu0 0.0
        %454 = vmatpush1.xpose.msra.mxu0 %v421
        %455 = vmatprep.subr.mxu0 0.0
        %456 = vmatpush1.xpose.msra.mxu0 0.0
        %457 = vmatprep.subr.mxu0 0.0
        %458 = vmatpush1.xpose.msra.mxu0 0.0
        %459 = vmatprep.subr.mxu0 0.0
        %460 = vmatpush1.xpose.msra.mxu0 0.0
        %461 = vmatprep.subr.mxu0 0.0
        %462 = vmatpush1.xpose.msra.mxu0 0.0
        %463 = vmatprep.subr.mxu0 0.0
        %464 = vmatpush1.xpose.msra.mxu0 0.0
        %465 = vmatprep.subr.mxu0 0.0
        %466 = vmatpush1.xpose.msra.mxu0 0.0
        %467 = vmatprep.subr.mxu0 0.0
        %468 = vmatpush1.xpose.msra.mxu0 0.0
        %469 = vmatprep.subr.mxu0 0.0
        %470 = vmatpush1.xpose.msra.mxu0 0.0
        %471 = vmatprep.subr.mxu0 0.0
        %472 = vmatpush1.xpose.msra.mxu0 0.0
        %473 = vmatprep.subr.mxu0 0.0
        %474 = vmatpush1.xpose.msra.mxu0 0.0
        %475 = vmatprep.subr.mxu0 0.0
        %476 = vmatpush1.xpose.msra.mxu0 0.0
        %477 = vmatprep.subr.mxu0 0.0
        %478 = vmatpush1.xpose.msra.mxu0 0.0
        %479 = vmatprep.subr.mxu0 0.0
        %480 = vmatpush1.xpose.msra.mxu0 0.0
        %481 = vmatprep.subr.mxu0 0.0
        %482 = vmatpush1.xpose.msra.mxu0 0.0
        %483 = vmatprep.subr.mxu0 0.0
        %484 = vmatpush1.xpose.msra.mxu0 0.0
        %485 = vmatprep.subr.mxu0 0.0
        %486 = vmatpush1.xpose.msra.mxu0 0.0
        %487 = vmatprep.mubr.f32.mxu0 0.0
        %488 = vmatmul.mubr.f32.gmra.mrb[0].mxu0 %v352
        %v489 = vpop.f32.mrb[0].mxu0
        %v490 = vadd.f32 0.0, %v489
        %v491 = vpop.f32.mrb[0].mxu0
        %492 = vmatprep.mubr.f32.mxu0 0.0
        %493 = vmatmul.mubr.f32.gmra.mrb[0].mxu0 %v355
        %v494 = vpop.f32.mrb[0].mxu0
        %v495 = vadd.f32 0.0, %v494
        %v496 = vpop.f32.mrb[0].mxu0
        %497 = vmatprep.mubr.f32.mxu0 0.0
        %498 = vmatmul.mubr.f32.gmra.mrb[0].mxu0 %v358
        %v499 = vpop.f32.mrb[0].mxu0
        %v500 = vadd.f32 0.0, %v499
        %v501 = vpop.f32.mrb[0].mxu0
        %502 = vmatprep.mubr.f32.mxu0 0.0
        %503 = vmatmul.mubr.f32.gmra.mrb[0].mxu0 %v361
        %v504 = vpop.f32.mrb[0].mxu0
        %v505 = vadd.f32 0.0, %v504
        %v506 = vpop.f32.mrb[0].mxu0
        %507 = vmatprep.mubr.f32.mxu0 0.0
        %508 = vmatmul.mubr.f32.gmra.mrb[0].mxu0 %v364
        %v509 = vpop.f32.mrb[0].mxu0
        %v510 = vadd.f32 0.0, %v509
        %v511 = vpop.f32.mrb[0].mxu0
        %512 = vmatprep.mubr.f32.mxu0 0.0
        %513 = vmatmul.mubr.f32.gmra.mrb[0].mxu0 %v367
        %v514 = vpop.f32.mrb[0].mxu0
        %v515 = vadd.f32 0.0, %v514
        %v516 = vpop.f32.mrb[0].mxu0
        %517 = vmatprep.mubr.f32.mxu0 0.0
        %518 = vmatmul.mubr.f32.gmra.mrb[0].mxu0 %v370
        %v519 = vpop.f32.mrb[0].mxu0
        %v520 = vadd.f32 0.0, %v519
        %v521 = vpop.f32.mrb[0].mxu0
        %522 = vmatprep.mubr.f32.mxu0 0.0
        %523 = vmatmul.mubr.f32.gmra.mrb[0].mxu0 %v373
        %v524 = vpop.f32.mrb[0].mxu0
        %v525 = vadd.f32 0.0, %v524
        %v526 = vpop.f32.mrb[0].mxu0
        %527 = vdwg.mxu0
        %v528 = vld [vmem:[%s2] sm:$0x1]
        %v530 = vlaneseq
        %v531 = vshrl.u32 %v530, 7
        %v532 = vsub.s32 0, %v531
        %v533 = vrot.slane %v528, %v532
        %v535 = vadd.f32 %v329, %v533
        %v536 = vadd.f32 %v332, %v533
        %v537 = vadd.f32 %v335, %v533
        %v538 = vadd.f32 %v338, %v533
        %v539 = vadd.f32 %v341, %v533
        %v540 = vadd.f32 %v344, %v533
        %v541 = vadd.f32 %v347, %v533
        %v542 = vadd.f32 %v350, %v533
        %v543 = vmul.f32 %v490, 2.0
        %v544 = vmul.f32 %v495, 2.0
        %v545 = vmul.f32 %v500, 2.0
        %v546 = vmul.f32 %v505, 2.0
        %v547 = vmul.f32 %v510, 2.0
        %v548 = vmul.f32 %v515, 2.0
        %v549 = vmul.f32 %v520, 2.0
        %v550 = vmul.f32 %v525, 2.0
        %v551 = vsub.f32 %v535, %v543
        %v552 = vsub.f32 %v536, %v544
        %v553 = vsub.f32 %v537, %v545
        %v554 = vsub.f32 %v538, %v546
        %v555 = vsub.f32 %v539, %v547
        %v556 = vsub.f32 %v540, %v548
        %v557 = vsub.f32 %v541, %v549
        %v558 = vsub.f32 %v542, %v550
        %559 = vmin.xlane.f32.xlu0 %v551
        %v560 = vpop.xlane.xlu0 %559
        %561 = vmin.xlane.f32.xlu0 %v552
        %v562 = vpop.xlane.xlu0 %561
        %563 = vmin.xlane.f32.xlu0 %v553
        %v564 = vpop.xlane.xlu0 %563
        %565 = vmin.xlane.f32.xlu0 %v554
        %v566 = vpop.xlane.xlu0 %565
        %567 = vmin.xlane.f32.xlu0 %v555
        %v568 = vpop.xlane.xlu0 %567
        %569 = vmin.xlane.f32.xlu0 %v556
        %v570 = vpop.xlane.xlu0 %569
        %571 = vmin.xlane.f32.xlu0 %v557
        %v572 = vpop.xlane.xlu0 %571
        %573 = vmin.xlane.f32.xlu0 %v558
        %v574 = vpop.xlane.xlu0 %573
        %v575 = vlaneseq
        %v576 = vand.u32 %v575, 127
        %vm577 = vcmp.eq.f32.partialorder %v551, %v560
        %vm578 = vcmp.eq.f32.partialorder %v552, %v562
        %vm579 = vcmp.eq.f32.partialorder %v553, %v564
        %vm580 = vcmp.eq.f32.partialorder %v554, %v566
        %vm581 = vcmp.eq.f32.partialorder %v555, %v568
        %vm582 = vcmp.eq.f32.partialorder %v556, %v570
        %vm583 = vcmp.eq.f32.partialorder %v557, %v572
        %vm584 = vcmp.eq.f32.partialorder %v558, %v574
        %v585 = vsel %vm577, %v576, 128
        %v586 = vsel %vm578, %v576, 128
        %v587 = vsel %vm579, %v576, 128
        %v588 = vsel %vm580, %v576, 128
        %v589 = vsel %vm581, %v576, 128
        %v590 = vsel %vm582, %v576, 128
        %v591 = vsel %vm583, %v576, 128
        %v592 = vsel %vm584, %v576, 128
        %v593 = vand.u32 %v585, 65535
        %v594 = vshra.s32 %v585, 16
        %v595 = vcvt.s32.f32 %v593
        %v596 = vcvt.s32.f32 %v594
        %597 = vmin.xlane.f32.xlu0 %v596
        %v598 = vpop.xlane.xlu0 %597
        %vm599 = vcmp.eq.f32.partialorder %v596, %v598
        %v600 = vsel %vm599, %v595, inf
        %601 = vmin.xlane.f32.xlu0 %v600
        %v602 = vpop.xlane.xlu0 %601
        %v603 = vcvt.f32.s32 %v602
        %v604 = vcvt.f32.s32 %v598
        %v605 = vshll.u32 %v604, 16
        %v606 = vadd.s32 %v605, %v603
        %v607 = vand.u32 %v586, 65535
        %v608 = vshra.s32 %v586, 16
        %v609 = vcvt.s32.f32 %v607
        %v610 = vcvt.s32.f32 %v608
        %611 = vmin.xlane.f32.xlu0 %v610
        %v612 = vpop.xlane.xlu0 %611
        %vm613 = vcmp.eq.f32.partialorder %v610, %v612
        %v614 = vsel %vm613, %v609, inf
        %615 = vmin.xlane.f32.xlu0 %v614
        %v616 = vpop.xlane.xlu0 %615
        %v617 = vcvt.f32.s32 %v616
        %v618 = vcvt.f32.s32 %v612
        %v619 = vshll.u32 %v618, 16
        %v620 = vadd.s32 %v619, %v617
        %v621 = vand.u32 %v587, 65535
        %v622 = vshra.s32 %v587, 16
        %v623 = vcvt.s32.f32 %v621
        %v624 = vcvt.s32.f32 %v622
        %625 = vmin.xlane.f32.xlu0 %v624
        %v626 = vpop.xlane.xlu0 %625
        %vm627 = vcmp.eq.f32.partialorder %v624, %v626
        %v628 = vsel %vm627, %v623, inf
        %629 = vmin.xlane.f32.xlu0 %v628
        %v630 = vpop.xlane.xlu0 %629
        %v631 = vcvt.f32.s32 %v630
        %v632 = vcvt.f32.s32 %v626
        %v633 = vshll.u32 %v632, 16
        %v634 = vadd.s32 %v633, %v631
        %v635 = vand.u32 %v588, 65535
        %v636 = vshra.s32 %v588, 16
        %v637 = vcvt.s32.f32 %v635
        %v638 = vcvt.s32.f32 %v636
        %639 = vmin.xlane.f32.xlu0 %v638
        %v640 = vpop.xlane.xlu0 %639
        %vm641 = vcmp.eq.f32.partialorder %v638, %v640
        %v642 = vsel %vm641, %v637, inf
        %643 = vmin.xlane.f32.xlu0 %v642
        %v644 = vpop.xlane.xlu0 %643
        %v645 = vcvt.f32.s32 %v644
        %v646 = vcvt.f32.s32 %v640
        %v647 = vshll.u32 %v646, 16
        %v648 = vadd.s32 %v647, %v645
        %v649 = vand.u32 %v589, 65535
        %v650 = vshra.s32 %v589, 16
        %v651 = vcvt.s32.f32 %v649
        %v652 = vcvt.s32.f32 %v650
        %653 = vmin.xlane.f32.xlu0 %v652
        %v654 = vpop.xlane.xlu0 %653
        %vm655 = vcmp.eq.f32.partialorder %v652, %v654
        %v656 = vsel %vm655, %v651, inf
        %657 = vmin.xlane.f32.xlu0 %v656
        %v658 = vpop.xlane.xlu0 %657
        %v659 = vcvt.f32.s32 %v658
        %v660 = vcvt.f32.s32 %v654
        %v661 = vshll.u32 %v660, 16
        %v662 = vadd.s32 %v661, %v659
        %v663 = vand.u32 %v590, 65535
        %v664 = vshra.s32 %v590, 16
        %v665 = vcvt.s32.f32 %v663
        %v666 = vcvt.s32.f32 %v664
        %667 = vmin.xlane.f32.xlu0 %v666
        %v668 = vpop.xlane.xlu0 %667
        %vm669 = vcmp.eq.f32.partialorder %v666, %v668
        %v670 = vsel %vm669, %v665, inf
        %671 = vmin.xlane.f32.xlu0 %v670
        %v672 = vpop.xlane.xlu0 %671
        %v673 = vcvt.f32.s32 %v672
        %v674 = vcvt.f32.s32 %v668
        %v675 = vshll.u32 %v674, 16
        %v676 = vadd.s32 %v675, %v673
        %v677 = vand.u32 %v591, 65535
        %v678 = vshra.s32 %v591, 16
        %v679 = vcvt.s32.f32 %v677
        %v680 = vcvt.s32.f32 %v678
        %681 = vmin.xlane.f32.xlu0 %v680
        %v682 = vpop.xlane.xlu0 %681
        %vm683 = vcmp.eq.f32.partialorder %v680, %v682
        %v684 = vsel %vm683, %v679, inf
        %685 = vmin.xlane.f32.xlu0 %v684
        %v686 = vpop.xlane.xlu0 %685
        %v687 = vcvt.f32.s32 %v686
        %v688 = vcvt.f32.s32 %v682
        %v689 = vshll.u32 %v688, 16
        %v690 = vadd.s32 %v689, %v687
        %v691 = vand.u32 %v592, 65535
        %v692 = vshra.s32 %v592, 16
        %v693 = vcvt.s32.f32 %v691
        %v694 = vcvt.s32.f32 %v692
        %695 = vmin.xlane.f32.xlu0 %v694
        %v696 = vpop.xlane.xlu0 %695
        %vm697 = vcmp.eq.f32.partialorder %v694, %v696
        %v698 = vsel %vm697, %v693, inf
        %699 = vmin.xlane.f32.xlu0 %v698
        %v700 = vpop.xlane.xlu0 %699
        %v701 = vcvt.f32.s32 %v700
        %v702 = vcvt.f32.s32 %v696
        %v703 = vshll.u32 %v702, 16
        %v704 = vadd.s32 %v703, %v701
        %vm705 = vcmp.eq.s32.totalorder %v576, %v606
        %vm706 = vcmp.eq.s32.totalorder %v576, %v620
        %vm707 = vcmp.eq.s32.totalorder %v576, %v634
        %vm708 = vcmp.eq.s32.totalorder %v576, %v648
        %vm709 = vcmp.eq.s32.totalorder %v576, %v662
        %vm710 = vcmp.eq.s32.totalorder %v576, %v676
        %vm711 = vcmp.eq.s32.totalorder %v576, %v690
        %vm712 = vcmp.eq.s32.totalorder %v576, %v704
        %v713 = vsel %vm705, 1, 0
        %v714 = vsel %vm706, 1, 0
        %v715 = vsel %vm707, 1, 0
        %v716 = vsel %vm708, 1, 0
        %v717 = vsel %vm709, 1, 0
        %v718 = vsel %vm710, 1, 0
        %v719 = vsel %vm711, 1, 0
        %v720 = vsel %vm712, 1, 0
        %v721 = vcvt.s32.f32 %v713
        %v722 = vcvt.s32.f32 %v714
        %v723 = vcvt.s32.f32 %v715
        %v724 = vcvt.s32.f32 %v716
        %v725 = vcvt.s32.f32 %v717
        %v726 = vcvt.s32.f32 %v718
        %v727 = vcvt.s32.f32 %v719
        %v728 = vcvt.s32.f32 %v720
        %729 = vmatprep.subr.mxu0 0.0
        %730 = vmatpush1.msra.mxu0 %v302
        %731 = vmatprep.subr.mxu0 0.0
        %732 = vmatpush1.msra.mxu0 %v303
        %733 = vmatprep.subr.mxu0 0.0
        %734 = vmatpush1.msra.mxu0 %v304
        %735 = vmatprep.subr.mxu0 0.0
        %736 = vmatpush1.msra.mxu0 %v305
        %737 = vmatprep.subr.mxu0 0.0
        %738 = vmatpush1.msra.mxu0 %v306
        %739 = vmatprep.subr.mxu0 0.0
        %740 = vmatpush1.msra.mxu0 %v307
        %741 = vmatprep.subr.mxu0 0.0
        %742 = vmatpush1.msra.mxu0 %v308
        %743 = vmatprep.subr.mxu0 0.0
        %744 = vmatpush1.msra.mxu0 %v309
        %745 = vmatprep.subr.mxu0 0.0
        %746 = vmatpush1.msra.mxu0 %v310
        %747 = vmatprep.subr.mxu0 0.0
        %748 = vmatpush1.msra.mxu0 %v311
        %749 = vmatprep.subr.mxu0 0.0
        %750 = vmatpush1.msra.mxu0 %v312
        %751 = vmatprep.subr.mxu0 0.0
        %752 = vmatpush1.msra.mxu0 %v313
        %753 = vmatprep.subr.mxu0 0.0
        %754 = vmatpush1.msra.mxu0 %v314
        %755 = vmatprep.subr.mxu0 0.0
        %756 = vmatpush1.msra.mxu0 %v315
        %757 = vmatprep.subr.mxu0 0.0
        %758 = vmatpush1.msra.mxu0 %v316
        %759 = vmatprep.subr.mxu0 0.0
        %760 = vmatpush1.msra.mxu0 %v317
        %761 = vmatprep.subr.mxu0 0.0
        %762 = vmatpush1.msra.mxu0 0.0
        %763 = vmatprep.subr.mxu0 0.0
        %764 = vmatpush1.msra.mxu0 0.0
        %765 = vmatprep.subr.mxu0 0.0
        %766 = vmatpush1.msra.mxu0 0.0
        %767 = vmatprep.subr.mxu0 0.0
        %768 = vmatpush1.msra.mxu0 0.0
        %769 = vmatprep.subr.mxu0 0.0
        %770 = vmatpush1.msra.mxu0 0.0
        %771 = vmatprep.subr.mxu0 0.0
        %772 = vmatpush1.msra.mxu0 0.0
        %773 = vmatprep.subr.mxu0 0.0
        %774 = vmatpush1.msra.mxu0 0.0
        %775 = vmatprep.subr.mxu0 0.0
        %776 = vmatpush1.msra.mxu0 0.0
        %777 = vmatprep.subr.mxu0 0.0
        %778 = vmatpush1.msra.mxu0 0.0
        %779 = vmatprep.subr.mxu0 0.0
        %780 = vmatpush1.msra.mxu0 0.0
        %781 = vmatprep.subr.mxu0 0.0
        %782 = vmatpush1.msra.mxu0 0.0
        %783 = vmatprep.subr.mxu0 0.0
        %784 = vmatpush1.msra.mxu0 0.0
        %785 = vmatprep.subr.mxu0 0.0
        %786 = vmatpush1.msra.mxu0 0.0
        %787 = vmatprep.subr.mxu0 0.0
        %788 = vmatpush1.msra.mxu0 0.0
        %789 = vmatprep.subr.mxu0 0.0
        %790 = vmatpush1.msra.mxu0 0.0
        %791 = vmatprep.subr.mxu0 0.0
        %792 = vmatpush1.msra.mxu0 0.0
        %793 = vmatprep.mubr.f32.mxu0 0.0
        %794 = vmatmul.mubr.f32.gmra.mrb[0].mxu0 %v721
        %v795 = vpop.f32.mrb[0].mxu0
        %v796 = vadd.f32 0.0, %v795
        %v797 = vpop.f32.mrb[0].mxu0
        %798 = vmatprep.mubr.f32.mxu0 0.0
        %799 = vmatmul.mubr.f32.gmra.mrb[0].mxu0 %v722
        %v800 = vpop.f32.mrb[0].mxu0
        %v801 = vadd.f32 0.0, %v800
        %v802 = vpop.f32.mrb[0].mxu0
        %803 = vmatprep.mubr.f32.mxu0 0.0
        %804 = vmatmul.mubr.f32.gmra.mrb[0].mxu0 %v723
        %v805 = vpop.f32.mrb[0].mxu0
        %v806 = vadd.f32 0.0, %v805
        %v807 = vpop.f32.mrb[0].mxu0
        %808 = vmatprep.mubr.f32.mxu0 0.0
        %809 = vmatmul.mubr.f32.gmra.mrb[0].mxu0 %v724
        %v810 = vpop.f32.mrb[0].mxu0
        %v811 = vadd.f32 0.0, %v810
        %v812 = vpop.f32.mrb[0].mxu0
        %813 = vmatprep.mubr.f32.mxu0 0.0
        %814 = vmatmul.mubr.f32.gmra.mrb[0].mxu0 %v725
        %v815 = vpop.f32.mrb[0].mxu0
        %v816 = vadd.f32 0.0, %v815
        %v817 = vpop.f32.mrb[0].mxu0
        %818 = vmatprep.mubr.f32.mxu0 0.0
        %819 = vmatmul.mubr.f32.gmra.mrb[0].mxu0 %v726
        %v820 = vpop.f32.mrb[0].mxu0
        %v821 = vadd.f32 0.0, %v820
        %v822 = vpop.f32.mrb[0].mxu0
        %823 = vmatprep.mubr.f32.mxu0 0.0
        %824 = vmatmul.mubr.f32.gmra.mrb[0].mxu0 %v727
        %v825 = vpop.f32.mrb[0].mxu0
        %v826 = vadd.f32 0.0, %v825
        %v827 = vpop.f32.mrb[0].mxu0
        %828 = vmatprep.mubr.f32.mxu0 0.0
        %829 = vmatmul.mubr.f32.gmra.mrb[0].mxu0 %v728
        %v830 = vpop.f32.mrb[0].mxu0
        %v831 = vadd.f32 0.0, %v830
        %v832 = vpop.f32.mrb[0].mxu0
        %833 = vdwg.mxu0
        %834 = vxpose.xlu0.b32.start [1/16] %v796, 128
        %835 = vxpose.xlu0.b32.cont [2/16] %v801, 128
        %836 = vxpose.xlu0.b32.cont [3/16] %v806, 128
        %837 = vxpose.xlu0.b32.cont [4/16] %v811, 128
        %838 = vxpose.xlu0.b32.cont [5/16] %v816, 128
        %839 = vxpose.xlu0.b32.cont [6/16] %v821, 128
        %840 = vxpose.xlu0.b32.cont [7/16] %v826, 128
        %841 = vxpose.xlu0.b32.cont [8/16] %v831, 128
        %842 = vxpose.xlu0.b32.cont [9/16] 0.0, 128
        %843 = vxpose.xlu0.b32.cont [10/16] 0.0, 128
        %844 = vxpose.xlu0.b32.cont [11/16] 0.0, 128
        %845 = vxpose.xlu0.b32.cont [12/16] 0.0, 128
        %846 = vxpose.xlu0.b32.cont [13/16] 0.0, 128
        %847 = vxpose.xlu0.b32.cont [14/16] 0.0, 128
        %848 = vxpose.xlu0.b32.cont [15/16] 0.0, 128
        %849 = vxpose.xlu0.b32.end [16/16] 0.0, 128
        %v850 = vpop.trf.xlu0
        %v851 = vpop.trf.xlu0
        %v852 = vpop.trf.xlu0
        %v853 = vpop.trf.xlu0
        %v854 = vpop.trf.xlu0
        %v855 = vpop.trf.xlu0
        %v856 = vpop.trf.xlu0
        %v857 = vpop.trf.xlu0
        %v858 = vpop.trf.xlu0
        %v859 = vpop.trf.xlu0
        %v860 = vpop.trf.xlu0
        %v861 = vpop.trf.xlu0
        %v862 = vpop.trf.xlu0
        %v863 = vpop.trf.xlu0
        %v864 = vpop.trf.xlu0
        %v865 = vpop.trf.xlu0
        %vm866 = vcmask 523264
        %867 = vst.msk [vmem:[%s247] sm:$0xff] %vm866, %v850
        %868 = vst.msk [vmem:[%s247 + $0x8] sm:$0xff] %vm866, %v851
        %v869 = vlaneseq
        %v870 = vshrl.u32 %v869, 7
        %v871 = vsub.s32 %v576, %v870
        %v872 = vrot.slane %v606, %v871
        %v873 = vadd.s32 %v576, 4294967288
        %v874 = vlaneseq
        %v875 = vshrl.u32 %v874, 7
        %v876 = vsub.s32 %v873, %v875
        %v877 = vrot.slane %v620, %v876
        %vm878 = vcmask 130112
        %v879 = vsel %vm878, %v877, %v872
        %v880 = vadd.s32 %v576, 4294967280
        %v881 = vlaneseq
        %v882 = vshrl.u32 %v881, 7
        %v883 = vsub.s32 %v880, %v882
        %v884 = vrot.slane %v634, %v883
        %vm885 = vcmask 195712
        %v886 = vsel %vm885, %v884, %v879
        %v887 = vadd.s32 %v576, 4294967272
        %v888 = vlaneseq
        %v889 = vshrl.u32 %v888, 7
        %v890 = vsub.s32 %v887, %v889
        %v891 = vrot.slane %v648, %v890
        %vm892 = vcmask 261312
        %v893 = vsel %vm892, %v891, %v886
        %v894 = vadd.s32 %v576, 4294967264
        %v895 = vlaneseq
        %v896 = vshrl.u32 %v895, 7
        %v897 = vsub.s32 %v894, %v896
        %v898 = vrot.slane %v662, %v897
        %vm899 = vcmask 326912
        %v900 = vsel %vm899, %v898, %v893
        %v901 = vadd.s32 %v576, 4294967256
        %v902 = vlaneseq
        %v903 = vshrl.u32 %v902, 7
        %v904 = vsub.s32 %v901, %v903
        %v905 = vrot.slane %v676, %v904
        %vm906 = vcmask 392512
        %v907 = vsel %vm906, %v905, %v900
        %v908 = vadd.s32 %v576, 4294967248
        %v909 = vlaneseq
        %v910 = vshrl.u32 %v909, 7
        %v911 = vsub.s32 %v908, %v910
        %v912 = vrot.slane %v690, %v911
        %vm913 = vcmask 458112
        %v914 = vsel %vm913, %v912, %v907
        %v915 = vadd.s32 %v576, 4294967240
        %v916 = vlaneseq
        %v917 = vshrl.u32 %v916, 7
        %v918 = vsub.s32 %v915, %v917
        %v919 = vrot.slane %v704, %v918
        %vm920 = vcmask 523712
        %v921 = vsel %vm920, %v919, %v914
        %vm922 = vcmask 516096
        %923 = vst.msk [vmem:[%s253] sm:$0x1] %vm922, %v921
        %v924 = vsub.f32 %v796, %v286
        %v925 = vsub.f32 %v801, %v287
        %v926 = vsub.f32 %v806, %v288
        %v927 = vsub.f32 %v811, %v289
        %v928 = vsub.f32 %v816, %v290
        %v929 = vsub.f32 %v821, %v291
        %v930 = vsub.f32 %v826, %v292
        %v931 = vsub.f32 %v831, %v293
        %v932 = vmul.f32 %v924, %v924
        %v933 = vmul.f32 %v925, %v925
        %v934 = vmul.f32 %v926, %v926
        %v935 = vmul.f32 %v927, %v927
        %v936 = vmul.f32 %v928, %v928
        %v937 = vmul.f32 %v929, %v929
        %v938 = vmul.f32 %v930, %v930
        %v939 = vmul.f32 %v931, %v931
        %v940 = vsel %vm326, %v932, 0.0
        %941 = vadd.xlane.f32.xlu0 %v940
        %v942 = vpop.xlane.xlu0 %941
        %v943 = vsel %vm326, %v933, 0.0
        %944 = vadd.xlane.f32.xlu0 %v943
        %v945 = vpop.xlane.xlu0 %944
        %v946 = vsel %vm326, %v934, 0.0
        %947 = vadd.xlane.f32.xlu0 %v946
        %v948 = vpop.xlane.xlu0 %947
        %v949 = vsel %vm326, %v935, 0.0
        %950 = vadd.xlane.f32.xlu0 %v949
        %v951 = vpop.xlane.xlu0 %950
        %v952 = vsel %vm326, %v936, 0.0
        %953 = vadd.xlane.f32.xlu0 %v952
        %v954 = vpop.xlane.xlu0 %953
        %v955 = vsel %vm326, %v937, 0.0
        %956 = vadd.xlane.f32.xlu0 %v955
        %v957 = vpop.xlane.xlu0 %956
        %v958 = vsel %vm326, %v938, 0.0
        %959 = vadd.xlane.f32.xlu0 %v958
        %v960 = vpop.xlane.xlu0 %959
        %v961 = vsel %vm326, %v939, 0.0
        %962 = vadd.xlane.f32.xlu0 %v961
        %v963 = vpop.xlane.xlu0 %962
        %v972 = vlaneseq
        %v973 = vshrl.u32 %v972, 7
        %v974 = vsub.s32 %v576, %v973
        %v975 = vrot.slane %v942, %v974
        %v976 = vlaneseq
        %v977 = vshrl.u32 %v976, 7
        %v978 = vsub.s32 %v873, %v977
        %v979 = vrot.slane %v945, %v978
        %v980 = vsel %vm878, %v979, %v975
        %v981 = vlaneseq
        %v982 = vshrl.u32 %v981, 7
        %v983 = vsub.s32 %v880, %v982
        %v984 = vrot.slane %v948, %v983
        %v985 = vsel %vm885, %v984, %v980
        %v986 = vlaneseq
        %v987 = vshrl.u32 %v986, 7
        %v988 = vsub.s32 %v887, %v987
        %v989 = vrot.slane %v951, %v988
        %v990 = vsel %vm892, %v989, %v985
        %v991 = vlaneseq
        %v992 = vshrl.u32 %v991, 7
        %v993 = vsub.s32 %v894, %v992
        %v994 = vrot.slane %v954, %v993
        %v995 = vsel %vm899, %v994, %v990
        %v996 = vlaneseq
        %v997 = vshrl.u32 %v996, 7
        %v998 = vsub.s32 %v901, %v997
        %v999 = vrot.slane %v957, %v998
        %v1000 = vsel %vm906, %v999, %v995
        %v1001 = vlaneseq
        %v1002 = vshrl.u32 %v1001, 7
        %v1003 = vsub.s32 %v908, %v1002
        %v1004 = vrot.slane %v960, %v1003
        %v1005 = vsel %vm913, %v1004, %v1000
        %v1006 = vlaneseq
        %v1007 = vshrl.u32 %v1006, 7
        %v1008 = vsub.s32 %v915, %v1007
        %v1009 = vrot.slane %v963, %v1008
        %v1010 = vsel %vm920, %v1009, %v1005
        %1012 = vst.msk [vmem:[%s259] sm:$0x1] %vm922, %v1010
        %s1013 = sand.u32 %s115, 1
        %s1014 = scalar_lea.sflag [#allocation3], %s1013
        %s1015 = sand.u32 %s115, 1
        %s1016 = smul.addr %s1015, 16
        %s1017 = scalar_lea.vmem [#allocation2], %s1016
        %s1018 = sand.u32 %s23, 1
        %s1019 = scalar_lea.sflag [#allocation5], %s1018
        %s1020 = sand.u32 %s143, 1
        %s1021 = scalar_lea.vmem [#allocation4], %s1020
        %s1022 = sand.u32 %s23, 1
        %s1023 = scalar_lea.sflag [#allocation5], %s1022
        %s1024 = sand.u32 %s171, 1
        %s1025 = scalar_lea.vmem [#allocation6], %s1024
        // Predicated region
        $region33: #{tpu_custom_call.1} parent=31 // pred_check
          %p1026 = pneg %p125
        $region34: #{tpu_custom_call.1} parent=31 // pred_check_branch
          %1028 = sbr.rel (%p1026) target = $region36
        $region35: #{tpu_custom_call.1} parent=31 // pred_region
          %s1030 = ssub.s32 256, 256
          %1031 = vsyncadd %s1014, %s1030
          %s1032 = smul.addr %s27, 2
          %s1033 = sadd.s32 %s28, %s1032
          %s1034 = smul.addr %s1033, 128
          %s1035 = scalar_lea.hbm %s3, %s1034
          %s1036 = sshll.u32 %s1017, 4
          %s1037 = int_to_ptr.vmem [resolvable:$true] %s1036
          %1042 = dma.vmem_to_hbm [thread:$0]  %s1037, 256, %s1035, %s1014, 128, 128, 8
        $region36: #{tpu_custom_call.1} parent=31 // pred_fallthru
          _
        // Predicated region
        $region37: #{tpu_custom_call.1} parent=31 // pred_check
          %p1043 = pneg %p153
        $region38: #{tpu_custom_call.1} parent=31 // pred_check_branch
          %1045 = sbr.rel (%p1043) target = $region40
        $region39: #{tpu_custom_call.1} parent=31 // pred_region
          %s1047 = ssub.s32 16, 16
          %1048 = vsyncadd %s1019, %s1047
          %s1049 = sadd.s32 %s28, %s27
          %s1050 = smul.addr %s1049, 16
          %s1051 = scalar_lea.hbm %s4, %s1050
          %s1053 = sshll.u32 %s1021, 4
          %s1054 = int_to_ptr.vmem [resolvable:$true] %s1053
          %1056 = dma.vmem_to_hbm [thread:$0]  %s1054, 16, %s1051, %s1019
        $region40: #{tpu_custom_call.1} parent=31 // pred_fallthru
          _
        // Predicated region
        $region41: #{tpu_custom_call.1} parent=31 // pred_check
          %p1057 = pneg %p181
        $region42: #{tpu_custom_call.1} parent=31 // pred_check_branch
          %1059 = sbr.rel (%p1057) target = $region44
        $region43: #{tpu_custom_call.1} parent=31 // pred_region
          %s1061 = ssub.s32 16, 16
          %1062 = vsyncadd %s1023, %s1061
          %s1063 = sadd.s32 %s28, %s27
          %s1064 = smul.addr %s1063, 16
          %s1065 = scalar_lea.hbm %s5, %s1064
          %s1067 = sshll.u32 %s1025, 4
          %s1068 = int_to_ptr.vmem [resolvable:$true] %s1067
          %1070 = dma.vmem_to_hbm [thread:$0]  %s1068, 16, %s1065, %s1023
        $region44: #{tpu_custom_call.1} parent=31 // pred_fallthru
          _
      $region32: #{tpu_custom_call.1} parent=5 // pred_fallthru
        _
      %p1071 = scmp.le.s32.totalorder 2, %s18
      // Predicated region
      $region45: #{tpu_custom_call.1} parent=5 // pred_check
        %p1072 = pneg %p1071
      $region46: #{tpu_custom_call.1} parent=5 // pred_check_branch
        %1074 = sbr.rel (%p1072) target = $region48
      $region47: #{tpu_custom_call.1} parent=5 // pred_region
        %s1075 = ssub.s32 %s18, 2
        // Predicated region
        $region49: #{tpu_custom_call.1} parent=47 // pred_check
          %p1076 = pneg %p131
        $region50: #{tpu_custom_call.1} parent=47 // pred_check_branch
          %1078 = sbr.rel (%p1076) target = $region52
        $region51: #{tpu_custom_call.1} parent=47 // pred_region
          %s1079 = sand.u32 %s116, 1
          %s1080 = scalar_lea.sflag [#allocation3], %s1079
          %s1081 = sand.u32 %s116, 1
          %s1082 = smul.addr %s1081, 16
          %s1083 = scalar_lea.vmem [#allocation2], %s1082
          %1084 = dma.done %s1080, 256
        $region52: #{tpu_custom_call.1} parent=47 // pred_fallthru
          _
        // Predicated region
        $region53: #{tpu_custom_call.1} parent=47 // pred_check
          %p1085 = pneg %p159
        $region54: #{tpu_custom_call.1} parent=47 // pred_check_branch
          %1087 = sbr.rel (%p1085) target = $region56
        $region55: #{tpu_custom_call.1} parent=47 // pred_region
          %s1088 = sand.u32 %s24, 1
          %s1089 = scalar_lea.sflag [#allocation5], %s1088
          %s1090 = sand.u32 %s144, 1
          %s1091 = scalar_lea.vmem [#allocation4], %s1090
          %1092 = dma.done %s1089, 16
        $region56: #{tpu_custom_call.1} parent=47 // pred_fallthru
          _
        // Predicated region
        $region57: #{tpu_custom_call.1} parent=47 // pred_check
          %p1093 = pneg %p187
        $region58: #{tpu_custom_call.1} parent=47 // pred_check_branch
          %1095 = sbr.rel (%p1093) target = $region60
        $region59: #{tpu_custom_call.1} parent=47 // pred_region
          %s1096 = sand.u32 %s24, 1
          %s1097 = scalar_lea.sflag [#allocation5], %s1096
          %s1098 = sand.u32 %s172, 1
          %s1099 = scalar_lea.vmem [#allocation6], %s1098
          %1100 = dma.done %s1097, 16
        $region60: #{tpu_custom_call.1} parent=47 // pred_fallthru
          _
      $region48: #{tpu_custom_call.1} parent=5 // pred_fallthru
        _
    $region6: #{tpu_custom_call.1} parent=1 // loop_footer
      %s22 = sadd.s32 1, %s18
    $region7: #{tpu_custom_call.1} parent=1 // loop_footer_branch
      %17 = sbr.rel target = $region3
    $region8: #{tpu_custom_call.1} parent=1 // loop_exit
      _
    %1101 = vsyncpa [#allocation3], 1
    %s1102 = scalar_lea.sflag [#allocation3], 1
    %1103 = vsyncpa %s1102, 1
    %1104 = vsyncpa [#allocation5], 1
    %s1105 = scalar_lea.sflag [#allocation5], 1
    %1106 = vsyncpa %s1105, 1

</llo_original>
